<compile_context>
chip_gen: v7x
topology: tpu7x:2x2x1
jax: 0.10.0
libtpu: 0.0.40
codegen_flags: <defaults>
</compile_context>

<pallas_src>
import functools

import jax
import jax.numpy as jnp
from jax.experimental import pallas as pl
from jax.experimental.pallas import tpu as pltpu

_LANES = 128
_TILE_BYTES = 2 << 20            # ~2 MiB per input block
_N_CHUNKS = 2                    # leading "parallel" axis (one accumulator per TC)
_VMEM_LIMIT_BYTES = 32 * 1024 * 1024


def _cdiv(a, b):
    return -(-a // b)


def _round_up(a, b):
    return _cdiv(a, b) * b


def _rmse_partial_kernel(pred_ref, targ_ref, sum_ref, cnt_ref, *,
                         valid_rows, row_tile, inner_steps, needs_row_mask):
    """Accumulate per-lane masked squared-error sum / count for one chunk."""
    c = pl.program_id(0)
    i = pl.program_id(1)

    # Resident accumulator init (output block index is constant along axis 1).
    @pl.when(i == 0)
    def _():
        sum_ref[...] = jnp.zeros_like(sum_ref)
        cnt_ref[...] = jnp.zeros_like(cnt_ref)

    t = targ_ref[...].astype(jnp.float32)
    p = pred_ref[...].astype(jnp.float32)

    mask = t > 0
    if needs_row_mask:
        # Ragged last block / dead block of the last chunk: rows past the true
        # extent hold garbage -> mask them off using the absolute row offset.
        abs_row0 = (c * inner_steps + i) * row_tile
        row_ids = jax.lax.broadcasted_iota(jnp.int32, t.shape, 0)
        mask = jnp.logical_and(mask, row_ids < (valid_rows - abs_row0))

    # NaN-safe: keep the where() form (garbage rows may contain NaN/Inf).
    d = jnp.where(mask, t - p, jnp.float32(0.0))
    sum_ref[0] += jnp.sum(d * d, axis=0, keepdims=True)
    # Per-block per-lane count <= row_tile (<= 4096), exact in f32; accumulate
    # exactly as int32 so huge batches keep an exact denominator.
    cnt_ref[0] += jnp.sum(mask.astype(jnp.float32), axis=0,
                          keepdims=True).astype(jnp.int32)


def _masked_sq_err_partials(pred2d, targ2d):
    """Per-chunk per-lane partial sums/counts over a lane-dense (R, 128) slab."""
    R, L = pred2d.shape
    itemsize = max(jnp.dtype(pred2d.dtype).itemsize,
                   jnp.dtype(targ2d.dtype).itemsize)

    # Row tile from a ~2 MiB byte budget in the native dtype; never let the
    # grid collapse to a single step (split rows across _N_CHUNKS chunks).
    rows_budget = max(8, (_TILE_BYTES // (L * itemsize)) // 8 * 8)
    if R >= 8:
        row_tile = min(rows_budget, _round_up(_cdiv(R, _N_CHUNKS), 8))
    else:
        row_tile = R                      # tiny input: block == full array dim
    total_blocks = _cdiv(R, row_tile)
    n_chunks = min(_N_CHUNKS, total_blocks)
    inner_steps = _cdiv(total_blocks, n_chunks)
    exact = (R % row_tile == 0) and (total_blocks == n_chunks * inner_steps)
    last_block = total_blocks - 1

    def in_map(c, i):
        # Clamp dead blocks (past the last real block) onto the last real
        # block; their contribution is zeroed by the in-kernel row mask.
        return (jnp.minimum(c * inner_steps + i, last_block), 0)

    def out_map(c, i):
        return (c, 0, 0)

    kernel = functools.partial(
        _rmse_partial_kernel,
        valid_rows=R, row_tile=row_tile, inner_steps=inner_steps,
        needs_row_mask=not exact)

    cost = pl.CostEstimate(
        flops=8 * R * L,
        transcendentals=0,
        bytes_accessed=R * L * (jnp.dtype(pred2d.dtype).itemsize
                                + jnp.dtype(targ2d.dtype).itemsize)
        + 2 * n_chunks * L * 4)

    return pl.pallas_call(
        kernel,
        out_shape=(
            jax.ShapeDtypeStruct((n_chunks, 1, L), jnp.float32),
            jax.ShapeDtypeStruct((n_chunks, 1, L), jnp.int32),
        ),
        grid_spec=pltpu.PrefetchScalarGridSpec(
            num_scalar_prefetch=0,
            grid=(n_chunks, inner_steps),
            in_specs=[
                pl.BlockSpec((row_tile, L), in_map),
                pl.BlockSpec((row_tile, L), in_map),
            ],
            out_specs=(
                pl.BlockSpec((1, 1, L), out_map),
                pl.BlockSpec((1, 1, L), out_map),
            ),
        ),
        compiler_params=pltpu.CompilerParams(
            dimension_semantics=("parallel", "arbitrary"),
            vmem_limit_bytes=_VMEM_LIMIT_BYTES,
        ),
        cost_estimate=cost,
    )(pred2d, targ2d)


@functools.partial(jax.jit, static_argnames=("unsqueeze",))
def rmse_loss(pred, target, unsqueeze=True):
    """JAX/Pallas equivalent of RMSE.forward(pred, target, unsqueeze)."""
    if unsqueeze:
        target = jnp.expand_dims(target, 1)
    # TODO(synk): bilinear F.upsample path for mismatched pred/target shapes not implemented.
    assert pred.shape == target.shape, (pred.shape, target.shape)

    total = 1
    for s in pred.shape:
        total *= int(s)

    pred_flat = pred.reshape(-1)
    targ_flat = target.reshape(-1)
    bulk_rows = total // _LANES
    bulk = bulk_rows * _LANES
    tail = total - bulk

    sum_sq = jnp.float32(0.0)
    count = jnp.int32(0)

    if bulk_rows > 0:
        if tail:
            # Rare non-multiple-of-128 case: kernel runs on the aligned bulk
            # prefix only (no full-tensor pad copy in HBM).
            pred2d = pred_flat[:bulk].reshape(bulk_rows, _LANES)
            targ2d = targ_flat[:bulk].reshape(bulk_rows, _LANES)
        else:
            pred2d = pred_flat.reshape(bulk_rows, _LANES)   # free bitcast reshape
            targ2d = targ_flat.reshape(bulk_rows, _LANES)
        sum_parts, cnt_parts = _masked_sq_err_partials(pred2d, targ2d)
        sum_sq = sum_sq + jnp.sum(sum_parts)
        count = count + jnp.sum(cnt_parts)

    if tail:
        # <128-element tail folded in with plain JAX (tiny epilogue).
        t_t = targ_flat[bulk:].astype(jnp.float32)
        p_t = pred_flat[bulk:].astype(jnp.float32)
        m_t = t_t > 0
        d_t = jnp.where(m_t, t_t - p_t, jnp.float32(0.0))
        sum_sq = sum_sq + jnp.sum(d_t * d_t)
        count = count + jnp.sum(m_t).astype(jnp.int32)

    # Matches torch: mean over masked elements (NaN when no target > 0).
    return jnp.sqrt(sum_sq / count.astype(jnp.float32))


def _reference(pred, target, unsqueeze=True):
    t = jnp.expand_dims(target, 1) if unsqueeze else target
    mask = t > 0
    sq = jnp.where(mask, (t.astype(jnp.float32) - pred.astype(jnp.float32)) ** 2, 0.0)
    return jnp.sqrt(jnp.sum(sq) / jnp.sum(mask))


if __name__ == "__main__":
    key = jax.random.PRNGKey(0)
    ks = jax.random.split(key, 8)

    def check(pred, targ):
        loss = jax.block_until_ready(rmse_loss(pred, targ, unsqueeze=True))
        ref = _reference(pred, targ, unsqueeze=True)
        assert jnp.allclose(loss, ref, rtol=1e-4, atol=1e-6), (loss, ref)

    # 1) Small canonical depth-loss shapes: pred (N,1,H,W), target (N,H,W).
    pred = jax.random.normal(ks[0], (2, 1, 16, 16), dtype=jnp.float32) + 2.0
    targ = jax.random.normal(ks[1], (2, 16, 16), dtype=jnp.float32) + 1.0
    check(pred, targ)

    # 2) Two exactly-tiled parallel chunks (exercises the megacore split path).
    pred = jax.random.normal(ks[2], (2, 1, 136, 1024), dtype=jnp.float32) + 2.0
    targ = jax.random.normal(ks[3], (2, 136, 1024), dtype=jnp.float32) + 1.0
    check(pred, targ)

    # 3) total % 128 != 0 (exercises the pure-JAX tail epilogue, no padding).
    pred = jax.random.normal(ks[4], (1, 1, 17, 19), dtype=jnp.float32) + 2.0
    targ = jax.random.normal(ks[5], (1, 17, 19), dtype=jnp.float32) + 1.0
    check(pred, targ)

    # 4) Multi-step accumulation per chunk + ragged last block + one dead block
    #    (8448 rows, 4096-row tiles -> 3 real blocks over a (2, 2) grid).
    pred = jax.random.normal(ks[6], (1, 1, 1056, 1024), dtype=jnp.float32) + 2.0
    targ = jax.random.normal(ks[7], (1, 1056, 1024), dtype=jnp.float32) + 1.0
    check(pred, targ)

    print("KERNEL_OK")
</pallas_src>

<mosaic_0001>
module attributes {stable_mosaic.version = 11 : i64} {
  func.func @_rmse_partial_kernel(%arg0: i32, %arg1: i32, %arg2: memref<4x128xf32, #tpu.memory_space<vmem>>, %arg3: memref<4x128xf32, #tpu.memory_space<vmem>>, %arg4: memref<1x1x128xf32, #tpu.memory_space<vmem>>, %arg5: memref<1x1x128xi32, #tpu.memory_space<vmem>>) attributes {dimension_semantics = [#tpu.dimension_semantics<parallel>, #tpu.dimension_semantics<arbitrary>], iteration_bounds = array<i64: 1, 1>, scalar_prefetch = 0 : i64, scratch_operands = 0 : i64, tpu.core_type = #tpu.core_type<tc>, window_params = [{transform_indices = @transform_0, window_bounds = array<i64: 4, 128>}, {transform_indices = @transform_1, window_bounds = array<i64: 4, 128>}, {transform_indices = @transform_2, window_bounds = array<i64: 1, 1, 128>}, {transform_indices = @transform_3, window_bounds = array<i64: 1, 1, 128>}]} {
    %c0_i32 = arith.constant 0 : i32
    %0 = arith.cmpi eq, %arg1, %c0_i32 : i32
    %1 = arith.extui %0 : i1 to i32
    %c0_i32_0 = arith.constant 0 : i32
    %2 = arith.cmpi ne, %1, %c0_i32_0 : i32
    scf.if %2 {
      %cst_19 = arith.constant 0.000000e+00 : f32
      %30 = vector.broadcast %cst_19 : f32 to vector<1x1x128xf32>
      %c0_20 = arith.constant 0 : index
      %c0_21 = arith.constant 0 : index
      %c0_22 = arith.constant 0 : index
      %31 = vector.load %arg4[%c0_20, %c0_21, %c0_22] : memref<1x1x128xf32, #tpu.memory_space<vmem>>, vector<1x1x128xf32>
      tpu.vector_store %arg4[%c0_20, %c0_21, %c0_22], %30 {strides = array<i32>} : memref<1x1x128xf32, #tpu.memory_space<vmem>>, vector<1x1x128xf32>,
      %c0_i32_23 = arith.constant 0 : i32
      %32 = vector.broadcast %c0_i32_23 : i32 to vector<1x1x128xi32>
      %c0_24 = arith.constant 0 : index
      %c0_25 = arith.constant 0 : index
      %c0_26 = arith.constant 0 : index
      %33 = vector.load %arg5[%c0_24, %c0_25, %c0_26] : memref<1x1x128xi32, #tpu.memory_space<vmem>>, vector<1x1x128xi32>
      tpu.vector_store %arg5[%c0_24, %c0_25, %c0_26], %32 {strides = array<i32>} : memref<1x1x128xi32, #tpu.memory_space<vmem>>, vector<1x1x128xi32>,
    } else {
    }
    %c0 = arith.constant 0 : index
    %c0_1 = arith.constant 0 : index
    %3 = vector.load %arg3[%c0, %c0_1] : memref<4x128xf32, #tpu.memory_space<vmem>>, vector<4x128xf32>
    %c0_2 = arith.constant 0 : index
    %c0_3 = arith.constant 0 : index
    %4 = vector.load %arg2[%c0_2, %c0_3] : memref<4x128xf32, #tpu.memory_space<vmem>>, vector<4x128xf32>
    %cst = arith.constant 0.000000e+00 : f32
    %5 = vector.broadcast %cst : f32 to vector<4x128xf32>
    %6 = arith.cmpf ogt, %3, %5 : vector<4x128xf32>
    %7 = arith.subf %3, %4 : vector<4x128xf32>
    %cst_4 = arith.constant 0.000000e+00 : f32
    %8 = vector.broadcast %cst_4 : f32 to vector<4x128xf32>
    %9 = arith.select %6, %7, %8 : vector<4x128xi1>, vector<4x128xf32>
    %c0_5 = arith.constant 0 : index
    %c0_6 = arith.constant 0 : index
    %c0_7 = arith.constant 0 : index
    %10 = vector.load %arg4[%c0_5, %c0_6, %c0_7] : memref<1x1x128xf32, #tpu.memory_space<vmem>>, vector<1x1x128xf32>
    %11 = vector.shape_cast %10 : vector<1x1x128xf32> to vector<1x128xf32>
    %12 = arith.mulf %9, %9 : vector<4x128xf32>
    %cst_8 = arith.constant dense<0.000000e+00> : vector<128xf32>
    %13 = vector.multi_reduction <add>, %12, %cst_8 [0] : vector<4x128xf32> to vector<128xf32>
    %14 = vector.shape_cast %13 : vector<128xf32> to vector<1x128xf32>
    %15 = arith.addf %11, %14 : vector<1x128xf32>
    %c0_9 = arith.constant 0 : index
    %c0_10 = arith.constant 0 : index
    %c0_11 = arith.constant 0 : index
    %16 = vector.load %arg4[%c0_9, %c0_10, %c0_11] : memref<1x1x128xf32, #tpu.memory_space<vmem>>, vector<1x1x128xf32>
    %17 = vector.shape_cast %16 : vector<1x1x128xf32> to vector<1x128xf32>
    %18 = vector.shape_cast %15 : vector<1x128xf32> to vector<1x1x128xf32>
    tpu.vector_store %arg4[%c0_9, %c0_10, %c0_11], %18 {strides = array<i32>} : memref<1x1x128xf32, #tpu.memory_space<vmem>>, vector<1x1x128xf32>,
    %c0_12 = arith.constant 0 : index
    %c0_13 = arith.constant 0 : index
    %c0_14 = arith.constant 0 : index
    %19 = vector.load %arg5[%c0_12, %c0_13, %c0_14] : memref<1x1x128xi32, #tpu.memory_space<vmem>>, vector<1x1x128xi32>
    %20 = vector.shape_cast %19 : vector<1x1x128xi32> to vector<1x128xi32>
    %21 = arith.extui %6 : vector<4x128xi1> to vector<4x128xi32>
    %22 = arith.sitofp %21 : vector<4x128xi32> to vector<4x128xf32>
    %cst_15 = arith.constant dense<0.000000e+00> : vector<128xf32>
    %23 = vector.multi_reduction <add>, %22, %cst_15 [0] : vector<4x128xf32> to vector<128xf32>
    %24 = vector.shape_cast %23 : vector<128xf32> to vector<1x128xf32>
    %25 = arith.fptosi %24 : vector<1x128xf32> to vector<1x128xi32>
    %26 = arith.addi %20, %25 : vector<1x128xi32>
    %c0_16 = arith.constant 0 : index
    %c0_17 = arith.constant 0 : index
    %c0_18 = arith.constant 0 : index
    %27 = vector.load %arg5[%c0_16, %c0_17, %c0_18] : memref<1x1x128xi32, #tpu.memory_space<vmem>>, vector<1x1x128xi32>
    %28 = vector.shape_cast %27 : vector<1x1x128xi32> to vector<1x128xi32>
    %29 = vector.shape_cast %26 : vector<1x128xi32> to vector<1x1x128xi32>
    tpu.vector_store %arg5[%c0_16, %c0_17, %c0_18], %29 {strides = array<i32>} : memref<1x1x128xi32, #tpu.memory_space<vmem>>, vector<1x1x128xi32>,
    return
  }
  func.func @transform_0(%arg0: i32, %arg1: i32) -> (i32, i32) {
    %c1_i32 = arith.constant 1 : i32
    %0 = arith.muli %arg0, %c1_i32 : i32
    %1 = arith.addi %0, %arg1 : i32
    %c0_i32 = arith.constant 0 : i32
    %2 = arith.minsi %1, %c0_i32 : i32
    %c0_i32_0 = arith.constant 0 : i32
    %c0_i32_1 = arith.constant 0 : i32
    return %2, %c0_i32_0 : i32, i32
  }
  func.func @transform_1(%arg0: i32, %arg1: i32) -> (i32, i32) {
    %c1_i32 = arith.constant 1 : i32
    %0 = arith.muli %arg0, %c1_i32 : i32
    %1 = arith.addi %0, %arg1 : i32
    %c0_i32 = arith.constant 0 : i32
    %2 = arith.minsi %1, %c0_i32 : i32
    %c0_i32_0 = arith.constant 0 : i32
    %c0_i32_1 = arith.constant 0 : i32
    return %2, %c0_i32_0 : i32, i32
  }
  func.func @transform_2(%arg0: i32, %arg1: i32) -> (i32, i32, i32) {
    %c0_i32 = arith.constant 0 : i32
    %c0_i32_0 = arith.constant 0 : i32
    %c0_i32_1 = arith.constant 0 : i32
    return %arg0, %c0_i32, %c0_i32_0 : i32, i32, i32
  }
  func.func @transform_3(%arg0: i32, %arg1: i32) -> (i32, i32, i32) {
    %c0_i32 = arith.constant 0 : i32
    %c0_i32_0 = arith.constant 0 : i32
    %c0_i32_1 = arith.constant 0 : i32
    return %arg0, %c0_i32, %c0_i32_0 : i32, i32, i32
  }
}

</mosaic_0001>

<llo_original>
// kernel: rmse_loss.1
$region0: #{rmse_loss.1}
  #allocation0 [shape = 'u32[]', space=smem, size = 0x4, offset = 0x4, fixed_abs, tag = 'smem constant byte address 0x4 - core index']
  #allocation1 [shape = 'u32[144,128]{1,0:T(1,128)}', space=vmem, size = 0x12000, scoped, tag = 'internal scratch']
  %s0 = inlined_call_operand.vmem [shape: f32[4,128], index: 0, kind: input, shape index: {}]
  %s1 = inlined_call_operand.vmem [shape: f32[4,128], index: 1, kind: input, shape index: {}]
  %s2 = inlined_call_operand.vmem [shape: f32[1,1,128], index: 2, kind: output, shape index: {0}]
  %s3 = inlined_call_operand.vmem [shape: s32[1,1,128], index: 3, kind: output, shape index: {1}]
  %4 = xla_tuple %s2, %s3
  %s5 = sld [smem:[#allocation0]]
  $region30: #{rmse_loss.1} parent=0
    _
  %s7 = ssub.s32 1, %s5
  %s8 = scalar_select 0, %s7, %s5
  // Predicated region
  $region2: #{rmse_loss.1} parent=0 // pred_check
    _
  $region3: #{rmse_loss.1} parent=0 // pred_check_branch
    %10 = sbr.rel (0) target = $region5
  $region4: #{rmse_loss.1} parent=0 // pred_region
    %s11 = sadd.s32 0, 0
    %p12 = scmp.lt.s32.totalorder %s11, 0
    %s13 = scalar_select %p12, %s11, 0
    %p14 = scmp.lt.s32.totalorder %s13, 0
    %s15 = scalar_select %p14, %s13, 0
    %s16 = smul.addr %s15, 4
    %s17 = scalar_lea.vmem %s0, %s16
    %s18 = sadd.s32 0, 0
    %p19 = scmp.lt.s32.totalorder %s18, 0
    %s20 = scalar_select %p19, %s18, 0
  $region5: #{rmse_loss.1} parent=0 // pred_fallthru
    _
  // Predicated region
  $region6: #{rmse_loss.1} parent=0 // pred_check
    _
  $region7: #{rmse_loss.1} parent=0 // pred_check_branch
    %22 = sbr.rel (0) target = $region9
  $region8: #{rmse_loss.1} parent=0 // pred_region
    %s23 = sadd.s32 0, 0
    %p24 = scmp.lt.s32.totalorder %s23, 0
    %s25 = scalar_select %p24, %s23, 0
    %p26 = scmp.lt.s32.totalorder %s25, 0
    %s27 = scalar_select %p26, %s25, 0
    %s28 = smul.addr %s27, 4
    %s29 = scalar_lea.vmem %s1, %s28
    %s30 = sadd.s32 0, 0
    %p31 = scmp.lt.s32.totalorder %s30, 0
    %s32 = scalar_select %p31, %s30, 0
  $region9: #{rmse_loss.1} parent=0 // pred_fallthru
    _
  %s33 = sadd.s32 0, 0
  %p34 = scmp.lt.s32.totalorder %s33, 0
  %s35 = scalar_select %p34, %s33, 0
  %p36 = scmp.lt.s32.totalorder %s35, 0
  %s37 = scalar_select %p36, %s35, 0
  %s38 = smul.addr %s37, 4
  %s39 = scalar_lea.vmem %s0, %s38
  %s40 = sadd.s32 0, 0
  %p41 = scmp.lt.s32.totalorder %s40, 0
  %s42 = scalar_select %p41, %s40, 0
  %p43 = scmp.lt.s32.totalorder %s42, 0
  %s44 = scalar_select %p43, %s42, 0
  %s45 = smul.addr %s44, 4
  %s46 = scalar_lea.vmem %s1, %s45
  %s47 = sadd.s32 0, 0
  %p48 = scmp.lt.s32.totalorder %s47, 0
  %s49 = scalar_select %p48, %s47, 0
  %p50 = scmp.lt.s32.totalorder %s49, 0
  %s51 = scalar_select %p50, %s49, 0
  %s52 = smul.addr %s51, 4
  %s53 = scalar_lea.vmem %s0, %s52
  %s54 = sadd.s32 0, 0
  %p55 = scmp.lt.s32.totalorder %s54, 0
  %s56 = scalar_select %p55, %s54, 0
  %s57 = sadd.s32 0, 0
  %p58 = scmp.lt.s32.totalorder %s57, 0
  %s59 = scalar_select %p58, %s57, 0
  %p60 = scmp.lt.s32.totalorder %s59, 0
  %s61 = scalar_select %p60, %s59, 0
  %s62 = smul.addr %s61, 4
  %s63 = scalar_lea.vmem %s1, %s62
  %s64 = sadd.s32 0, 0
  %p65 = scmp.lt.s32.totalorder %s64, 0
  %s66 = scalar_select %p65, %s64, 0
  %p67 = scmp.eq.s32.totalorder 0, 0
  // Predicated region
  $region10: #{rmse_loss.1} parent=0 // pred_check
    %p68 = pneg %p67
  $region11: #{rmse_loss.1} parent=0 // pred_check_branch
    %70 = sbr.rel (%p68) target = $region13
  $region12: #{rmse_loss.1} parent=0 // pred_region
    %71 = vst [vmem:[%s2] sm:$0x1] 0.0
    %72 = vst [vmem:[%s3] sm:$0x1] 0
  $region13: #{rmse_loss.1} parent=0 // pred_fallthru
    _
  %v73 = vld [vmem:[%s63] sm:$0xf]
  %v74 = vld [vmem:[%s53] sm:$0xf]
  %vm75 = vcmp.gt.f32.partialorder %v73, 0.0
  %v76 = vsub.f32 %v73, %v74
  %v77 = vsel %vm75, %v76, 0.0
  %v78 = vld [vmem:[%s2] sm:$0x1]
  %v79 = vmul.f32 %v77, %v77
  %vm80 = vcmask 1043456
  %v81 = vsel %vm80, %v79, 0.0
  %v82 = vrot.slane %v81, 4
  %v83 = vadd.f32 %v81, %v82
  %v84 = vrot.slane %v83, 2
  %v85 = vadd.f32 %v83, %v84
  %v86 = vrot.slane %v85, 1
  %v87 = vadd.f32 %v85, %v86
  %v88 = vadd.f32 %v78, %v87
  %89 = vst [vmem:[%s2] sm:$0x1] %v88
  %v90 = vld [vmem:[%s3] sm:$0x1]
  %v91 = vsel %vm75, 1, 0
  %v92 = vcvt.s32.f32 %v91
  %v93 = vsel %vm80, %v92, 0.0
  %v94 = vrot.slane %v93, 4
  %v95 = vadd.f32 %v93, %v94
  %v96 = vrot.slane %v95, 2
  %v97 = vadd.f32 %v95, %v96
  %v98 = vrot.slane %v97, 1
  %v99 = vadd.f32 %v97, %v98
  %v100 = vcvt.f32.s32.to.zero.pseudo %v99
  %v101 = vadd.s32 %v90, %v100
  %102 = vst [vmem:[%s3] sm:$0x1] %v101
  // Predicated region
  $region14: #{rmse_loss.1} parent=0 // pred_check
    _
  $region15: #{rmse_loss.1} parent=0 // pred_check_branch
    %104 = sbr.rel (0) target = $region17
  $region16: #{rmse_loss.1} parent=0 // pred_region
    _
  $region17: #{rmse_loss.1} parent=0 // pred_fallthru
    _
  // Predicated region
  $region18: #{rmse_loss.1} parent=0 // pred_check
    _
  $region19: #{rmse_loss.1} parent=0 // pred_check_branch
    %106 = sbr.rel (0) target = $region21
  $region20: #{rmse_loss.1} parent=0 // pred_region
    _
  $region21: #{rmse_loss.1} parent=0 // pred_fallthru
    _
  // Predicated region
  $region22: #{rmse_loss.1} parent=0 // pred_check
    _
  $region23: #{rmse_loss.1} parent=0 // pred_check_branch
    %108 = sbr.rel (0) target = $region25
  $region24: #{rmse_loss.1} parent=0 // pred_region
    _
  $region25: #{rmse_loss.1} parent=0 // pred_fallthru
    _
  // Predicated region
  $region26: #{rmse_loss.1} parent=0 // pred_check
    _
  $region27: #{rmse_loss.1} parent=0 // pred_check_branch
    %110 = sbr.rel (0) target = $region29
  $region28: #{rmse_loss.1} parent=0 // pred_region
    _
  $region29: #{rmse_loss.1} parent=0 // pred_fallthru
    _

</llo_original>
